<compile_context>
chip_gen: v5e
topology: v5e:2x2
jax: 0.10.0
libtpu: 0.0.40
codegen_flags: <defaults>
</compile_context>

<pallas_src>
import functools

import jax
import jax.numpy as jnp
from jax import lax
from jax.experimental import pallas as pl
from jax.experimental.pallas import tpu as pltpu

_NEG_INF_FILL = -10000000000.0  # same constant as the PyTorch module's masked_fill


# ---------------------------------------------------------------------------
# Kernel helpers
# ---------------------------------------------------------------------------
def _apply_mask(scores, mask_tile):
    # Compare the narrow mask tile directly (no f32 conversion pass on the VPU).
    pred = mask_tile if mask_tile.dtype == jnp.bool_ else (mask_tile != 0)
    return jnp.where(pred, jnp.float32(_NEG_INF_FILL), scores)


def _refine_reciprocal(denom):
    # EUP approximate reciprocal + 2 Newton-Raphson steps on the tiny (TQ, 1)
    # vector: full f32 accuracy, no VALU divide sequence.
    inv = pl.reciprocal(denom, approx=True)
    inv = inv * (2.0 - denom * inv)
    inv = inv * (2.0 - denom * inv)
    return inv


# ---------------------------------------------------------------------------
# Single-pass kernel (return_attn=True): full (TQ, Lk) scores per step.
# ---------------------------------------------------------------------------
def _sdpa_attn_kernel(*refs, inv_temperature, has_mask, mxu_dtype):
    it = iter(refs)
    q_ref = next(it)
    k_ref = next(it)
    v_ref = next(it)
    mask_ref = next(it) if has_mask else None
    out_ref = next(it)
    attn_ref = next(it)

    # Fold 1/temperature into q in f32, then downcast once for the MXU.
    q = (q_ref[0].astype(jnp.float32) * inv_temperature).astype(mxu_dtype)
    k = k_ref[0].astype(mxu_dtype)

    # scores = q @ k^T on the MXU (contract last dims, no explicit transpose).
    scores = lax.dot_general(
        q, k,
        dimension_numbers=(((1,), (1,)), ((), ())),
        preferred_element_type=jnp.float32,
    )
    if has_mask:
        scores = _apply_mask(scores, mask_ref[0])

    # Numerically stable softmax over the key axis.
    s_max = jnp.max(scores, axis=-1, keepdims=True)
    e = jnp.exp(scores - s_max)
    denom = jnp.sum(e, axis=-1, keepdims=True)
    attn = e * _refine_reciprocal(denom)

    # TODO(synk): nn.Dropout(0.1) is identity in eval mode; training-mode dropout
    # would use pltpu.prng_seed / pltpu.prng_random_bits here.

    out = lax.dot_general(
        attn.astype(mxu_dtype), v_ref[0].astype(mxu_dtype),
        dimension_numbers=(((1,), (0,)), ((), ())),
        preferred_element_type=jnp.float32,
    )
    out_ref[0] = out.astype(out_ref.dtype)
    attn_ref[0] = attn.astype(attn_ref.dtype)


# ---------------------------------------------------------------------------
# Flash-style kernel (return_attn=False): online softmax across KV tiles.
# ---------------------------------------------------------------------------
def _sdpa_flash_kernel(*refs, inv_temperature, has_mask, mxu_dtype):
    it = iter(refs)
    q_ref = next(it)
    k_ref = next(it)
    v_ref = next(it)
    mask_ref = next(it) if has_mask else None
    out_ref = next(it)
    acc_ref = next(it)   # (TQ, Dv) f32
    m_ref = next(it)     # (TQ, 1)  f32 running max
    l_ref = next(it)     # (TQ, 1)  f32 running denom

    kv = pl.program_id(2)

    @pl.when(kv == 0)
    def _init():
        m_ref[...] = jnp.full(m_ref.shape, -jnp.inf, jnp.float32)
        l_ref[...] = jnp.zeros(l_ref.shape, jnp.float32)
        acc_ref[...] = jnp.zeros(acc_ref.shape, jnp.float32)

    q = (q_ref[0].astype(jnp.float32) * inv_temperature).astype(mxu_dtype)
    k = k_ref[0].astype(mxu_dtype)
    s = lax.dot_general(
        q, k,
        dimension_numbers=(((1,), (1,)), ((), ())),
        preferred_element_type=jnp.float32,
    )
    if has_mask:
        s = _apply_mask(s, mask_ref[0])

    m_prev = m_ref[...]
    m_new = jnp.maximum(m_prev, jnp.max(s, axis=-1, keepdims=True))
    alpha = jnp.exp(m_prev - m_new)
    p = jnp.exp(s - m_new)
    l_ref[...] = alpha * l_ref[...] + jnp.sum(p, axis=-1, keepdims=True)
    acc_ref[...] = alpha * acc_ref[...] + lax.dot_general(
        p.astype(mxu_dtype), v_ref[0].astype(mxu_dtype),
        dimension_numbers=(((1,), (0,)), ((), ())),
        preferred_element_type=jnp.float32,
    )
    m_ref[...] = m_new

    @pl.when(kv == pl.num_programs(2) - 1)
    def _finish():
        inv = _refine_reciprocal(l_ref[...])
        out_ref[0] = (acc_ref[...] * inv).astype(out_ref.dtype)


# ---------------------------------------------------------------------------
# Tiling / VMEM helpers
# ---------------------------------------------------------------------------
def _choose_tq(lq, tq_max):
    """Q tile: full Lq if it fits, else an MXU-friendly tile (pl.cdiv grid)."""
    if lq <= tq_max:
        return lq
    tq = (tq_max // 128) * 128          # prefer >=128 (fills MXU M dim)
    if tq == 0:
        tq = max(8, (tq_max // 8) * 8)  # degenerate tq_max: fall back to 8-multiple
    return tq


def _choose_tk(lk, tk_max, lane_multiple_required):
    """KV tile that divides Lk (avoids OOB garbage feeding the online softmax)."""
    if lk <= tk_max:
        return lk
    steps = (128,) if lane_multiple_required else (128, 8)
    for step in steps:
        t = (tk_max // step) * step
        while t >= step:
            if lk % t == 0:
                return t
            t -= step
    return lk  # no clean divisor: single KV block (degenerates to single pass)


def _vmem_limit_bytes(estimate):
    """Clamp the scoped-VMEM request to the chip's real capacity (v7x = 64 MiB)."""
    try:
        cap = int(pltpu.get_tpu_info().vmem_capacity_bytes)
    except Exception:
        cap = 64 * 1024 * 1024          # conservative (v7x) fallback
    cap = (cap * 7) // 8                # leave headroom for compiler internals
    floor = min(32 * 1024 * 1024, cap)
    return max(min(int(estimate), cap), floor)


def _vmem_bytes_single(tq, lk, d, dv, itemsize, has_mask):
    n = 2 * tq * d * itemsize           # q tiles (double buffered)
    n += 2 * lk * d * itemsize          # k (batch-resident, still 2 pipeline bufs)
    n += 2 * lk * dv * itemsize         # v
    if has_mask:
        n += 2 * tq * lk                # 1-byte mask tiles
    n += 2 * tq * dv * itemsize         # out tiles
    n += 2 * tq * lk * itemsize         # attn tiles
    n += 4 * tq * lk * 4                # f32 scores/exp/attn temporaries
    n += 2 * 1024 * 1024                # slack
    return n


def _vmem_bytes_flash(tq, tk, d, dv, itemsize, has_mask):
    n = 2 * tq * d * itemsize
    n += 2 * tk * d * itemsize
    n += 2 * tk * dv * itemsize
    if has_mask:
        n += 2 * tq * tk
    n += 2 * tq * dv * itemsize
    n += (tq * dv + 2 * tq) * 4         # acc/m/l scratch
    n += 4 * tq * tk * 4                # f32 score/exp temporaries
    n += 2 * 1024 * 1024
    return n


# ---------------------------------------------------------------------------
# Public wrapper
# ---------------------------------------------------------------------------
def scaled_dot_product_attention(q, k, v, mask=None, *, temperature,
                                 return_attn=True, tq_max=256, tk_max=512,
                                 mxu_dtype=jnp.bfloat16):
    """Pallas TPU forward pass of ScaledDotProductAttention.

    Returns (output, attn) when return_attn=True (module semantics), otherwise
    just output via a flash-style kernel whose VMEM footprint is independent of Lk
    (skips the O(Lq*Lk) attn HBM writeback — strongly recommended on v5e).
    mxu_dtype=jnp.bfloat16 feeds the MXU at full rate; use jnp.float32 for
    bit-accurate results.
    """
    q = jnp.asarray(q)
    k = jnp.asarray(k)
    v = jnp.asarray(v)
    B, Lq, D = q.shape
    Bk, Lk, Dk = k.shape
    Bv, Lkv, Dv = v.shape
    assert (Bk, Dk) == (B, D) and (Bv, Lkv) == (B, Lk)

    has_mask = mask is not None
    mask_arr = None
    if has_mask:
        mask_arr = jnp.asarray(mask)
        assert mask_arr.shape == (B, Lq, Lk)
        if mask_arr.dtype not in (jnp.int8, jnp.uint8):
            # Narrow bool/int32 masks to 1 byte once in the wrapper; int8/uint8
            # masks pass through untouched.  The kernel compares `!= 0` directly.
            mask_arr = mask_arr.astype(jnp.int8)

    inv_temp = 1.0 / float(temperature)
    itemsize = q.dtype.itemsize
    TQ = _choose_tq(Lq, tq_max)
    nQ = pl.cdiv(Lq, TQ)

    if return_attn:
        # ---------------- single-pass path (attn materialized) ----------------
        in_specs = [
            pl.BlockSpec((1, TQ, D), lambda b, i: (b, i, 0)),
            pl.BlockSpec((1, Lk, D), lambda b, i: (b, 0, 0)),   # batch-resident
            pl.BlockSpec((1, Lk, Dv), lambda b, i: (b, 0, 0)),  # batch-resident
        ]
        inputs = [q, k, v]
        if has_mask:
            in_specs.append(pl.BlockSpec((1, TQ, Lk), lambda b, i: (b, i, 0)))
            inputs.append(mask_arr)

        out_shapes = (jax.ShapeDtypeStruct((B, Lq, Dv), q.dtype),
                      jax.ShapeDtypeStruct((B, Lq, Lk), q.dtype))
        out_specs = [pl.BlockSpec((1, TQ, Dv), lambda b, i: (b, i, 0)),
                     pl.BlockSpec((1, TQ, Lk), lambda b, i: (b, i, 0))]

        kernel = functools.partial(_sdpa_attn_kernel, inv_temperature=inv_temp,
                                   has_mask=has_mask, mxu_dtype=mxu_dtype)
        # Megacore split along batch (keeps the batch-resident K/V per core); when
        # B == 1 the q axis is the only useful parallel axis.
        dims = ("parallel", "arbitrary") if B > 1 else ("parallel", "parallel")
        vmem = _vmem_limit_bytes(
            _vmem_bytes_single(TQ, Lk, D, Dv, itemsize, has_mask))

        out, attn = pl.pallas_call(
            kernel,
            out_shape=out_shapes,
            grid_spec=pltpu.PrefetchScalarGridSpec(
                num_scalar_prefetch=0,
                grid=(B, nQ),
                in_specs=in_specs,
                out_specs=out_specs,
            ),
            compiler_params=pltpu.CompilerParams(
                dimension_semantics=dims,
                vmem_limit_bytes=vmem),
        )(*inputs)
        return out, attn

    # -------------------- flash path (output only) --------------------
    TK = _choose_tk(Lk, tk_max, lane_multiple_required=has_mask)
    nKV = Lk // TK

    in_specs = [
        pl.BlockSpec((1, TQ, D), lambda b, i, j: (b, i, 0)),
        pl.BlockSpec((1, TK, D), lambda b, i, j: (b, j, 0)),
        pl.BlockSpec((1, TK, Dv), lambda b, i, j: (b, j, 0)),
    ]
    inputs = [q, k, v]
    if has_mask:
        in_specs.append(pl.BlockSpec((1, TQ, TK), lambda b, i, j: (b, i, j)))
        inputs.append(mask_arr)

    # TODO(synk): when Dv < 128, a lane-dense output layout (folding B into the
    # last dim) would turn the masked vst.msk stores into full-width stores.
    out_shape = jax.ShapeDtypeStruct((B, Lq, Dv), q.dtype)
    out_spec = pl.BlockSpec((1, TQ, Dv), lambda b, i, j: (b, i, 0))

    kernel = functools.partial(_sdpa_flash_kernel, inv_temperature=inv_temp,
                               has_mask=has_mask, mxu_dtype=mxu_dtype)
    vmem = _vmem_limit_bytes(_vmem_bytes_flash(TQ, TK, D, Dv, itemsize, has_mask))

    out = pl.pallas_call(
        kernel,
        out_shape=out_shape,
        grid_spec=pltpu.PrefetchScalarGridSpec(
            num_scalar_prefetch=0,
            grid=(B, nQ, nKV),                 # KV (reduction) axis innermost
            in_specs=in_specs,
            out_specs=out_spec,
            scratch_shapes=[pltpu.VMEM((TQ, Dv), jnp.float32),
                            pltpu.VMEM((TQ, 1), jnp.float32),
                            pltpu.VMEM((TQ, 1), jnp.float32)],
        ),
        compiler_params=pltpu.CompilerParams(
            dimension_semantics=("parallel", "parallel", "arbitrary"),
            vmem_limit_bytes=vmem),
    )(*inputs)
    return out


# ---------------------------------------------------------------------------
# Demo / correctness check
# ---------------------------------------------------------------------------
if __name__ == "__main__":
    key = jax.random.PRNGKey(0)
    kq, kk, kv_, km = jax.random.split(key, 4)

    B, Lq, Lk, D, Dv = 2, 8, 8, 32, 32
    temperature = float(D) ** 0.5  # typical caller value (sqrt(d_k))

    q = jax.random.normal(kq, (B, Lq, D), dtype=jnp.float32)
    k = jax.random.normal(kk, (B, Lk, D), dtype=jnp.float32)
    v = jax.random.normal(kv_, (B, Lk, Dv), dtype=jnp.float32)
    mask = jax.random.bernoulli(km, p=0.25, shape=(B, Lq, Lk))  # True = masked out

    # pure-JAX reference (mirrors the PyTorch module)
    def ref(q, k, v, mask):
        s = jnp.einsum("bqd,bkd->bqk", q, k) / temperature
        if mask is not None:
            s = jnp.where(mask, _NEG_INF_FILL, s)
        a = jax.nn.softmax(s, axis=2)
        return jnp.einsum("bqk,bkd->bqd", a, v), a

    r_out0, r_attn0 = ref(q, k, v, None)
    r_out1, r_attn1 = ref(q, k, v, mask)

    # --- f32 MXU path: bit-accurate checks --------------------------------
    out0, attn0 = scaled_dot_product_attention(
        q, k, v, None, temperature=temperature, mxu_dtype=jnp.float32)
    out1, attn1 = scaled_dot_product_attention(
        q, k, v, mask, temperature=temperature, mxu_dtype=jnp.float32)
    out2 = scaled_dot_product_attention(
        q, k, v, mask, temperature=temperature, return_attn=False,
        mxu_dtype=jnp.float32)

    # --- default bf16 MXU path: looser tolerance ---------------------------
    out3, attn3 = scaled_dot_product_attention(q, k, v, mask,
                                               temperature=temperature)
    out4 = scaled_dot_product_attention(q, k, v, mask, temperature=temperature,
                                        return_attn=False)

    jax.block_until_ready((out0, attn0, out1, attn1, out2, out3, attn3, out4))

    assert jnp.allclose(out0, r_out0, atol=1e-4), "no-mask output mismatch (f32)"
    assert jnp.allclose(attn0, r_attn0, atol=1e-4), "no-mask attn mismatch (f32)"
    assert jnp.allclose(out1, r_out1, atol=1e-4), "masked output mismatch (f32)"
    assert jnp.allclose(attn1, r_attn1, atol=1e-4), "masked attn mismatch (f32)"
    assert jnp.allclose(out2, r_out1, atol=1e-4), "flash output mismatch (f32)"
    assert jnp.allclose(out3, r_out1, atol=5e-2), "masked output mismatch (bf16)"
    assert jnp.allclose(attn3, r_attn1, atol=5e-2), "masked attn mismatch (bf16)"
    assert jnp.allclose(out4, r_out1, atol=5e-2), "flash output mismatch (bf16)"

    print("KERNEL_OK")
</pallas_src>

<mosaic_0001>
module attributes {stable_mosaic.version = 11 : i64} {
  func.func @_sdpa_attn_kernel(%arg0: i32, %arg1: i32, %arg2: memref<1x8x32xf32, #tpu.memory_space<vmem>>, %arg3: memref<1x8x32xf32, #tpu.memory_space<vmem>>, %arg4: memref<1x8x32xf32, #tpu.memory_space<vmem>>, %arg5: memref<1x8x32xf32, #tpu.memory_space<vmem>>, %arg6: memref<1x8x8xf32, #tpu.memory_space<vmem>>) attributes {dimension_semantics = [#tpu.dimension_semantics<parallel>, #tpu.dimension_semantics<arbitrary>], iteration_bounds = array<i64: 2, 1>, scalar_prefetch = 0 : i64, scratch_operands = 0 : i64, tpu.core_type = #tpu.core_type<tc>, window_params = [{transform_indices = @transform_0, window_bounds = array<i64: 1, 8, 32>}, {transform_indices = @transform_1, window_bounds = array<i64: 1, 8, 32>}, {transform_indices = @transform_2, window_bounds = array<i64: 1, 8, 32>}, {transform_indices = @transform_3, window_bounds = array<i64: 1, 8, 32>}, {transform_indices = @transform_4, window_bounds = array<i64: 1, 8, 8>}]} {
    %c0 = arith.constant 0 : index
    %c0_0 = arith.constant 0 : index
    %c0_1 = arith.constant 0 : index
    %0 = vector.load %arg2[%c0, %c0_0, %c0_1] : memref<1x8x32xf32, #tpu.memory_space<vmem>>, vector<1x8x32xf32>
    %1 = vector.shape_cast %0 : vector<1x8x32xf32> to vector<8x32xf32>
    %cst = arith.constant 0.176776692 : f32
    %2 = vector.broadcast %cst : f32 to vector<8x32xf32>
    %3 = arith.mulf %1, %2 : vector<8x32xf32>
    %c0_2 = arith.constant 0 : index
    %c0_3 = arith.constant 0 : index
    %c0_4 = arith.constant 0 : index
    %4 = vector.load %arg3[%c0_2, %c0_3, %c0_4] : memref<1x8x32xf32, #tpu.memory_space<vmem>>, vector<1x8x32xf32>
    %5 = vector.shape_cast %4 : vector<1x8x32xf32> to vector<8x32xf32>
    %cst_5 = arith.constant dense<0.000000e+00> : vector<8x8xf32>
    %6 = tpu.matmul %3, %5, %cst_5 {dimension_numbers = #tpu.dot_dimension_numbers<[1], [1], [0], [0], [0, 0, 1, 0], [], []>} : vector<8x32xf32>, vector<8x32xf32>, vector<8x8xf32> -> vector<8x8xf32>
    %cst_6 = arith.constant dense<0xFF800000> : vector<8xf32>
    %7 = vector.multi_reduction <maximumf>, %6, %cst_6 [1] : vector<8x8xf32> to vector<8xf32>
    %8 = vector.shape_cast %7 : vector<8xf32> to vector<8x1xf32>
    %9 = vector.broadcast %8 : vector<8x1xf32> to vector<8x8xf32>
    %10 = arith.subf %6, %9 : vector<8x8xf32>
    %11 = math.exp %10 : vector<8x8xf32>
    %cst_7 = arith.constant dense<0.000000e+00> : vector<8xf32>
    %12 = vector.multi_reduction <add>, %11, %cst_7 [1] : vector<8x8xf32> to vector<8xf32>
    %13 = vector.shape_cast %12 : vector<8xf32> to vector<8x1xf32>
    %14 = tpu.reciprocal %13 {approx = true} : vector<8x1xf32> -> vector<8x1xf32>
    %15 = arith.mulf %13, %14 : vector<8x1xf32>
    %cst_8 = arith.constant 2.000000e+00 : f32
    %16 = vector.broadcast %cst_8 : f32 to vector<8x1xf32>
    %17 = arith.subf %16, %15 : vector<8x1xf32>
    %18 = arith.mulf %14, %17 : vector<8x1xf32>
    %19 = arith.mulf %13, %18 : vector<8x1xf32>
    %cst_9 = arith.constant 2.000000e+00 : f32
    %20 = vector.broadcast %cst_9 : f32 to vector<8x1xf32>
    %21 = arith.subf %20, %19 : vector<8x1xf32>
    %22 = arith.mulf %18, %21 : vector<8x1xf32>
    %23 = vector.broadcast %22 : vector<8x1xf32> to vector<8x8xf32>
    %24 = arith.mulf %11, %23 : vector<8x8xf32>
    %c0_10 = arith.constant 0 : index
    %c0_11 = arith.constant 0 : index
    %c0_12 = arith.constant 0 : index
    %25 = vector.load %arg4[%c0_10, %c0_11, %c0_12] : memref<1x8x32xf32, #tpu.memory_space<vmem>>, vector<1x8x32xf32>
    %26 = vector.shape_cast %25 : vector<1x8x32xf32> to vector<8x32xf32>
    %cst_13 = arith.constant dense<0.000000e+00> : vector<8x32xf32>
    %27 = tpu.matmul %24, %26, %cst_13 {dimension_numbers = #tpu.dot_dimension_numbers<[1], [0], [0], [1], [0, 0, 1, 1], [], []>} : vector<8x8xf32>, vector<8x32xf32>, vector<8x32xf32> -> vector<8x32xf32>
    %c0_14 = arith.constant 0 : index
    %c0_15 = arith.constant 0 : index
    %c0_16 = arith.constant 0 : index
    %28 = vector.load %arg5[%c0_14, %c0_15, %c0_16] : memref<1x8x32xf32, #tpu.memory_space<vmem>>, vector<1x8x32xf32>
    %29 = vector.shape_cast %28 : vector<1x8x32xf32> to vector<8x32xf32>
    %30 = vector.shape_cast %27 : vector<8x32xf32> to vector<1x8x32xf32>
    tpu.vector_store %arg5[%c0_14, %c0_15, %c0_16], %30 {strides = array<i32>} : memref<1x8x32xf32, #tpu.memory_space<vmem>>, vector<1x8x32xf32>,
    %c0_17 = arith.constant 0 : index
    %c0_18 = arith.constant 0 : index
    %c0_19 = arith.constant 0 : index
    %31 = vector.load %arg6[%c0_17, %c0_18, %c0_19] : memref<1x8x8xf32, #tpu.memory_space<vmem>>, vector<1x8x8xf32>
    %32 = vector.shape_cast %31 : vector<1x8x8xf32> to vector<8x8xf32>
    %33 = vector.shape_cast %24 : vector<8x8xf32> to vector<1x8x8xf32>
    tpu.vector_store %arg6[%c0_17, %c0_18, %c0_19], %33 {strides = array<i32>} : memref<1x8x8xf32, #tpu.memory_space<vmem>>, vector<1x8x8xf32>,
    return
  }
  func.func @transform_0(%arg0: i32, %arg1: i32) -> (i32, i32, i32) {
    %c0_i32 = arith.constant 0 : i32
    %c0_i32_0 = arith.constant 0 : i32
    return %arg0, %arg1, %c0_i32 : i32, i32, i32
  }
  func.func @transform_1(%arg0: i32, %arg1: i32) -> (i32, i32, i32) {
    %c0_i32 = arith.constant 0 : i32
    %c0_i32_0 = arith.constant 0 : i32
    %c0_i32_1 = arith.constant 0 : i32
    return %arg0, %c0_i32, %c0_i32_0 : i32, i32, i32
  }
  func.func @transform_2(%arg0: i32, %arg1: i32) -> (i32, i32, i32) {
    %c0_i32 = arith.constant 0 : i32
    %c0_i32_0 = arith.constant 0 : i32
    %c0_i32_1 = arith.constant 0 : i32
    return %arg0, %c0_i32, %c0_i32_0 : i32, i32, i32
  }
  func.func @transform_3(%arg0: i32, %arg1: i32) -> (i32, i32, i32) {
    %c0_i32 = arith.constant 0 : i32
    %c0_i32_0 = arith.constant 0 : i32
    return %arg0, %arg1, %c0_i32 : i32, i32, i32
  }
  func.func @transform_4(%arg0: i32, %arg1: i32) -> (i32, i32, i32) {
    %c0_i32 = arith.constant 0 : i32
    %c0_i32_0 = arith.constant 0 : i32
    return %arg0, %arg1, %c0_i32 : i32, i32, i32
  }
}

</mosaic_0001>

<llo_original>
// kernel: tpu_custom_call.1
$region0: #{tpu_custom_call.1}
  #allocation0 [shape = 'u32[]', space=smem, size = 0x4, offset = 0x4, fixed_abs, tag = 'smem constant byte address 0x4 - core index']
  #allocation1 [shape = 'u32[72,128]{1,0:T(1,128)}', space=vmem, size = 0x9000, scoped, tag = 'internal scratch']
  %s0 = inlined_call_operand.hbm [shape: f32[2,8,32], index: 0, kind: input, shape index: {}]
  %s1 = inlined_call_operand.hbm [shape: f32[2,8,32], index: 1, kind: input, shape index: {}]
  %s2 = inlined_call_operand.hbm [shape: f32[2,8,32], index: 2, kind: input, shape index: {}]
  %s3 = inlined_call_operand.hbm [shape: f32[2,8,32], index: 3, kind: output, shape index: {0}]
  %s4 = inlined_call_operand.hbm [shape: f32[2,8,8], index: 4, kind: output, shape index: {1}]
  %5 = xla_tuple %s3, %s4
  %s6 = sld [smem:[#allocation0]]
  $region65: #{tpu_custom_call.1} parent=0
    _
  %s8 = ssub.s32 1, %s6
  %s9 = scalar_select 0, %s8, %s6
  $region1: #{tpu_custom_call.1} parent=0
    #allocation2 [shape = 'u8[8192]{0}', space=vmem, size = 0x2000, scoped, tag = 'input window, operand 0']
    #allocation3 [shape = 's32[2]{0}', space=sflag, size = 0x8, scoped, tag = 'scoped memory for tpu_custom_call.1']
    #allocation4 [shape = 's32[2]{0}', space=sflag, size = 0x8, scoped, tag = 'scoped memory for tpu_custom_call.1']
    #allocation5 [shape = 'u8[8192]{0}', space=vmem, size = 0x2000, scoped, tag = 'input window, operand 1']
    #allocation6 [shape = 's32[2]{0}', space=sflag, size = 0x8, scoped, tag = 'scoped memory for tpu_custom_call.1']
    #allocation7 [shape = 'u8[8192]{0}', space=vmem, size = 0x2000, scoped, tag = 'input window, operand 2']
    #allocation8 [shape = 'u8[8192]{0}', space=vmem, size = 0x2000, scoped, tag = 'output window, operand 0']
    #allocation9 [shape = 'u8[8192]{0}', space=vmem, size = 0x2000, scoped, tag = 'output window, operand 1']
    #allocation10 [shape = 's32[2]{0}', space=sflag, size = 0x8, scoped, tag = 'scoped memory for tpu_custom_call.1']
    %10 = vsyncpa [#allocation3], 0
    %s11 = scalar_lea.sflag [#allocation3], 1
    %12 = vsyncpa %s11, 0
    %13 = vsyncpa [#allocation6], 0
    %s14 = scalar_lea.sflag [#allocation6], 1
    %15 = vsyncpa %s14, 0
    %16 = vsyncpa [#allocation4], 0
    %s17 = scalar_lea.sflag [#allocation4], 1
    %18 = vsyncpa %s17, 0
    %19 = vsyncpa [#allocation10], 0
    %s20 = scalar_lea.sflag [#allocation10], 1
    %21 = vsyncpa %s20, 0
    loop: start=0, step=1, limit=4
    $region2: #{tpu_custom_call.1} parent=1 // loop_pre_header
      _
    $region3: #{tpu_custom_call.1} parent=1 // loop_header
      %s23 = sphi 0, %s27
      %p24 = scmp.ge.s32.totalorder %s23, 4
      %s30 = sphi 0, %s42
      %s31 = sphi 0, %s38
      %s32 = sphi 0, %s30
      %s33 = sphi 0, %s31
      %s34 = sphi 0, %s32
      %s35 = sphi 0, %s33
      %s47 = sphi 0, %s49
      %s50 = sphi 0, %s47
      %s51 = sphi 0, %s50
      %s67 = sphi 0, %s51
      %s73 = sphi 0, %s75
      %s76 = sphi 0, %s73
      %s77 = sphi 0, %s76
      %s93 = sphi 0, %s77
      %s99 = sphi 0, %s101
      %s102 = sphi 0, %s99
      %s103 = sphi 0, %s102
      %s119 = sphi 0, %s103
      %s127 = sphi 0, %s129
      %s130 = sphi 0, %s127
      %s131 = sphi 0, %s130
      %s147 = sphi 0, %s131
      %s155 = sphi 0, %s157
      %s158 = sphi 0, %s155
      %s159 = sphi 0, %s158
      %s175 = sphi 0, %s159
    $region4: #{tpu_custom_call.1} parent=1 // loop_header_branch
      %26 = sbr.rel (%p24) target = $region8
    $region5: #{tpu_custom_call.1} parent=1 // loop_body
      %s28 = ssub.s32 %s23, 1
      %s29 = ssub.s32 %s23, 2
      %s36 = sadd.s32 1, %s31
      %p37 = scmp.ge.s32.totalorder %s36, 1
      %s38 = scalar_select %p37, 0, %s36
      %s39 = sadd.s32 1, %s30
      %s40 = scalar_select %p37, %s39, %s30
      %p41 = scmp.ge.s32.totalorder %s40, 2
      %s42 = scalar_select %p41, 0, %s40
      %s43 = ssub.s32 %s30, %s42
      %s44 = ssub.s32 %s31, %s38
      %s45 = sor.u32 %s43, %s44
      %p46 = scmp.eq.s32.totalorder %s45, 0
      %s48 = sadd.s32 %s47, 1
      %s49 = scalar_select %p46, %s47, %s48
      %p52 = pneg %p46
      %p53 = scmp.eq.s32.totalorder %s23, 1
      %p54 = por %p52, %p53
      %p55 = scmp.ne.s32.totalorder %s47, %s50
      %p56 = scmp.eq.s32.totalorder %s23, 0
      %p57 = por %p55, %p56
      %p58 = scmp.ne.s32.totalorder %s47, %s50
      %p59 = scmp.eq.s32.totalorder %s28, 1
      %p60 = por %p58, %p59
      %p61 = scmp.ne.s32.totalorder %s50, %s51
      %p62 = scmp.eq.s32.totalorder %s28, 0
      %p63 = por %p61, %p62
      %p64 = scmp.ne.s32.totalorder %s50, %s51
      %p65 = scmp.eq.s32.totalorder %s29, 1
      %p66 = por %p64, %p65
      %p68 = scmp.ne.s32.totalorder %s51, %s67
      %p69 = scmp.eq.s32.totalorder %s29, 0
      %p70 = por %p68, %p69
      %s71 = ssub.s32 %s30, %s42
      %p72 = scmp.eq.s32.totalorder %s71, 0
      %s74 = sadd.s32 %s73, 1
      %s75 = scalar_select %p72, %s73, %s74
      %p78 = pneg %p72
      %p79 = scmp.eq.s32.totalorder %s23, 1
      %p80 = por %p78, %p79
      %p81 = scmp.ne.s32.totalorder %s73, %s76
      %p82 = scmp.eq.s32.totalorder %s23, 0
      %p83 = por %p81, %p82
      %p84 = scmp.ne.s32.totalorder %s73, %s76
      %p85 = scmp.eq.s32.totalorder %s28, 1
      %p86 = por %p84, %p85
      %p87 = scmp.ne.s32.totalorder %s76, %s77
      %p88 = scmp.eq.s32.totalorder %s28, 0
      %p89 = por %p87, %p88
      %p90 = scmp.ne.s32.totalorder %s76, %s77
      %p91 = scmp.eq.s32.totalorder %s29, 1
      %p92 = por %p90, %p91
      %p94 = scmp.ne.s32.totalorder %s77, %s93
      %p95 = scmp.eq.s32.totalorder %s29, 0
      %p96 = por %p94, %p95
      %s97 = ssub.s32 %s30, %s42
      %p98 = scmp.eq.s32.totalorder %s97, 0
      %s100 = sadd.s32 %s99, 1
      %s101 = scalar_select %p98, %s99, %s100
      %p104 = pneg %p98
      %p105 = scmp.eq.s32.totalorder %s23, 1
      %p106 = por %p104, %p105
      %p107 = scmp.ne.s32.totalorder %s99, %s102
      %p108 = scmp.eq.s32.totalorder %s23, 0
      %p109 = por %p107, %p108
      %p110 = scmp.ne.s32.totalorder %s99, %s102
      %p111 = scmp.eq.s32.totalorder %s28, 1
      %p112 = por %p110, %p111
      %p113 = scmp.ne.s32.totalorder %s102, %s103
      %p114 = scmp.eq.s32.totalorder %s28, 0
      %p115 = por %p113, %p114
      %p116 = scmp.ne.s32.totalorder %s102, %s103
      %p117 = scmp.eq.s32.totalorder %s29, 1
      %p118 = por %p116, %p117
      %p120 = scmp.ne.s32.totalorder %s103, %s119
      %p121 = scmp.eq.s32.totalorder %s29, 0
      %p122 = por %p120, %p121
      %s123 = ssub.s32 %s30, %s42
      %s124 = ssub.s32 %s31, %s38
      %s125 = sor.u32 %s123, %s124
      %p126 = scmp.eq.s32.totalorder %s125, 0
      %s128 = sadd.s32 %s127, 1
      %s129 = scalar_select %p126, %s127, %s128
      %p132 = pneg %p126
      %p133 = scmp.eq.s32.totalorder %s23, 1
      %p134 = por %p132, %p133
      %p135 = scmp.ne.s32.totalorder %s127, %s130
      %p136 = scmp.eq.s32.totalorder %s23, 0
      %p137 = por %p135, %p136
      %p138 = scmp.ne.s32.totalorder %s127, %s130
      %p139 = scmp.eq.s32.totalorder %s28, 1
      %p140 = por %p138, %p139
      %p141 = scmp.ne.s32.totalorder %s130, %s131
      %p142 = scmp.eq.s32.totalorder %s28, 0
      %p143 = por %p141, %p142
      %p144 = scmp.ne.s32.totalorder %s130, %s131
      %p145 = scmp.eq.s32.totalorder %s29, 1
      %p146 = por %p144, %p145
      %p148 = scmp.ne.s32.totalorder %s131, %s147
      %p149 = scmp.eq.s32.totalorder %s29, 0
      %p150 = por %p148, %p149
      %s151 = ssub.s32 %s30, %s42
      %s152 = ssub.s32 %s31, %s38
      %s153 = sor.u32 %s151, %s152
      %p154 = scmp.eq.s32.totalorder %s153, 0
      %s156 = sadd.s32 %s155, 1
      %s157 = scalar_select %p154, %s155, %s156
      %p160 = pneg %p154
      %p161 = scmp.eq.s32.totalorder %s23, 1
      %p162 = por %p160, %p161
      %p163 = scmp.ne.s32.totalorder %s155, %s158
      %p164 = scmp.eq.s32.totalorder %s23, 0
      %p165 = por %p163, %p164
      %p166 = scmp.ne.s32.totalorder %s155, %s158
      %p167 = scmp.eq.s32.totalorder %s28, 1
      %p168 = por %p166, %p167
      %p169 = scmp.ne.s32.totalorder %s158, %s159
      %p170 = scmp.eq.s32.totalorder %s28, 0
      %p171 = por %p169, %p170
      %p172 = scmp.ne.s32.totalorder %s158, %s159
      %p173 = scmp.eq.s32.totalorder %s29, 1
      %p174 = por %p172, %p173
      %p176 = scmp.ne.s32.totalorder %s159, %s175
      %p177 = scmp.eq.s32.totalorder %s29, 0
      %p178 = por %p176, %p177
      %p179 = scmp.le.s32.totalorder 1, %s23
      %p180 = scmp.lt.s32.totalorder %s23, 3
      %p181 = pnand %p179, %p180
      %p182 = pneg %p181
      // Predicated region
      $region9: #{tpu_custom_call.1} parent=5 // pred_check
        _
      $region10: #{tpu_custom_call.1} parent=5 // pred_check_branch
        %184 = sbr.rel (%p181) target = $region12
      $region11: #{tpu_custom_call.1} parent=5 // pred_region
        %s185 = ssub.s32 %s23, 1
      $region12: #{tpu_custom_call.1} parent=5 // pred_fallthru
        _
      %p186 = scmp.lt.s32.totalorder %s23, 2
      // Predicated region
      $region13: #{tpu_custom_call.1} parent=5 // pred_check
        %p187 = pneg %p186
      $region14: #{tpu_custom_call.1} parent=5 // pred_check_branch
        %189 = sbr.rel (%p187) target = $region16
      $region15: #{tpu_custom_call.1} parent=5 // pred_region
        // Predicated region
        $region17: #{tpu_custom_call.1} parent=15 // pred_check
          %p190 = pneg %p57
        $region18: #{tpu_custom_call.1} parent=15 // pred_check_branch
          %192 = sbr.rel (%p190) target = $region20
        $region19: #{tpu_custom_call.1} parent=15 // pred_region
          %s193 = sand.u32 %s47, 1
          %s194 = scalar_lea.sflag [#allocation3], %s193
          %s195 = sand.u32 %s47, 1
          %s196 = smul.addr %s195, 8
          %s197 = scalar_lea.vmem [#allocation2], %s196
          %199 = vsyncadd %s194, 0
          %s200 = sadd.s32 %s31, %s30
          %s201 = smul.addr %s200, 8
          %s202 = scalar_lea.hbm %s0, %s201
          %s204 = sshll.u32 %s202, 4
          %s205 = int_to_ptr.hbm [resolvable:$true] %s204
          %s206 = sshll.u32 %s197, 4
          %s207 = int_to_ptr.vmem [resolvable:$true] %s206
          %209 = dma.hbm_to_vmem [thread:$0]  %s205, 128, %s207, %s194
        $region20: #{tpu_custom_call.1} parent=15 // pred_fallthru
          _
        // Predicated region
        $region21: #{tpu_custom_call.1} parent=15 // pred_check
          %p210 = pneg %p83
        $region22: #{tpu_custom_call.1} parent=15 // pred_check_branch
          %212 = sbr.rel (%p210) target = $region24
        $region23: #{tpu_custom_call.1} parent=15 // pred_region
          %s213 = sand.u32 %s23, 1
          %s214 = scalar_lea.sflag [#allocation6], %s213
          %s215 = sand.u32 %s73, 1
          %s216 = smul.addr %s215, 8
          %s217 = scalar_lea.vmem [#allocation5], %s216
          %219 = vsyncadd %s214, 0
          %s220 = smul.addr %s30, 8
          %s221 = scalar_lea.hbm %s1, %s220
          %s223 = sshll.u32 %s221, 4
          %s224 = int_to_ptr.hbm [resolvable:$true] %s223
          %s225 = sshll.u32 %s217, 4
          %s226 = int_to_ptr.vmem [resolvable:$true] %s225
          %228 = dma.hbm_to_vmem [thread:$0]  %s224, 128, %s226, %s214
        $region24: #{tpu_custom_call.1} parent=15 // pred_fallthru
          _
        // Predicated region
        $region25: #{tpu_custom_call.1} parent=15 // pred_check
          %p229 = pneg %p109
        $region26: #{tpu_custom_call.1} parent=15 // pred_check_branch
          %231 = sbr.rel (%p229) target = $region28
        $region27: #{tpu_custom_call.1} parent=15 // pred_region
          %s232 = sand.u32 %s23, 1
          %s233 = scalar_lea.sflag [#allocation6], %s232
          %s234 = sand.u32 %s99, 1
          %s235 = smul.addr %s234, 8
          %s236 = scalar_lea.vmem [#allocation7], %s235
          %238 = vsyncadd %s233, 0
          %s239 = smul.addr %s30, 8
          %s240 = scalar_lea.hbm %s2, %s239
          %s242 = sshll.u32 %s240, 4
          %s243 = int_to_ptr.hbm [resolvable:$true] %s242
          %s244 = sshll.u32 %s236, 4
          %s245 = int_to_ptr.vmem [resolvable:$true] %s244
          %247 = dma.hbm_to_vmem [thread:$0]  %s243, 128, %s245, %s233
        $region28: #{tpu_custom_call.1} parent=15 // pred_fallthru
          _
      $region16: #{tpu_custom_call.1} parent=5 // pred_fallthru
        _
      %p248 = scmp.le.s32.totalorder 1, %s23
      %p249 = scmp.lt.s32.totalorder %s23, 3
      %p250 = pnand %p248, %p249
      %p251 = pneg %p250
      // Predicated region
      $region29: #{tpu_custom_call.1} parent=5 // pred_check
        _
      $region30: #{tpu_custom_call.1} parent=5 // pred_check_branch
        %253 = sbr.rel (%p250) target = $region32
      $region31: #{tpu_custom_call.1} parent=5 // pred_region
        %s254 = ssub.s32 %s23, 1
        %s255 = sand.u32 %s50, 1
        %s256 = scalar_lea.sflag [#allocation3], %s255
        %s257 = sand.u32 %s50, 1
        %s258 = smul.addr %s257, 8
        %s259 = scalar_lea.vmem [#allocation2], %s258
        // Predicated region
        $region33: #{tpu_custom_call.1} parent=31 // pred_check
          %p260 = pneg %p63
        $region34: #{tpu_custom_call.1} parent=31 // pred_check_branch
          %262 = sbr.rel (%p260) target = $region36
        $region35: #{tpu_custom_call.1} parent=31 // pred_region
          %264 = dma.done %s256, 128
        $region36: #{tpu_custom_call.1} parent=31 // pred_fallthru
          _
        %s265 = sand.u32 %s28, 1
        %s266 = scalar_lea.sflag [#allocation6], %s265
        %s267 = sand.u32 %s76, 1
        %s268 = smul.addr %s267, 8
        %s269 = scalar_lea.vmem [#allocation5], %s268
        // Predicated region
        $region37: #{tpu_custom_call.1} parent=31 // pred_check
          %p270 = pneg %p89
        $region38: #{tpu_custom_call.1} parent=31 // pred_check_branch
          %272 = sbr.rel (%p270) target = $region40
        $region39: #{tpu_custom_call.1} parent=31 // pred_region
          %274 = dma.done %s266, 128
        $region40: #{tpu_custom_call.1} parent=31 // pred_fallthru
          _
        %s275 = sand.u32 %s28, 1
        %s276 = scalar_lea.sflag [#allocation6], %s275
        %s277 = sand.u32 %s102, 1
        %s278 = smul.addr %s277, 8
        %s279 = scalar_lea.vmem [#allocation7], %s278
        // Predicated region
        $region41: #{tpu_custom_call.1} parent=31 // pred_check
          %p280 = pneg %p115
        $region42: #{tpu_custom_call.1} parent=31 // pred_check_branch
          %282 = sbr.rel (%p280) target = $region44
        $region43: #{tpu_custom_call.1} parent=31 // pred_region
          %284 = dma.done %s276, 128
        $region44: #{tpu_custom_call.1} parent=31 // pred_fallthru
          _
        %s285 = sand.u32 %s50, 1
        %s286 = scalar_lea.sflag [#allocation3], %s285
        %s287 = sand.u32 %s50, 1
        %s288 = smul.addr %s287, 8
        %s289 = scalar_lea.vmem [#allocation2], %s288
        %p290 = pneg %p63
        %p291 = pneg %p60
        %s292 = sand.u32 %s28, 1
        %s293 = scalar_lea.sflag [#allocation6], %s292
        %s294 = sand.u32 %s76, 1
        %s295 = smul.addr %s294, 8
        %s296 = scalar_lea.vmem [#allocation5], %s295
        %p297 = pneg %p89
        %p298 = pneg %p86
        %s299 = sand.u32 %s28, 1
        %s300 = scalar_lea.sflag [#allocation6], %s299
        %s301 = sand.u32 %s102, 1
        %s302 = smul.addr %s301, 8
        %s303 = scalar_lea.vmem [#allocation7], %s302
        %p304 = pneg %p115
        %p305 = pneg %p112
        %p306 = pneg %p143
        %p307 = pneg %p140
        %s308 = sand.u32 %s130, 1
        %s309 = scalar_lea.sflag [#allocation4], %s308
        %s310 = sand.u32 %s130, 1
        %s311 = smul.addr %s310, 8
        %s312 = scalar_lea.vmem [#allocation8], %s311
        %p313 = pneg %p171
        %p314 = pneg %p168
        %s315 = sand.u32 %s158, 1
        %s316 = scalar_lea.sflag [#allocation10], %s315
        %s317 = sand.u32 %s158, 1
        %s318 = smul.addr %s317, 8
        %s319 = scalar_lea.vmem [#allocation9], %s318
        %v320 = vld [vmem:[%s259] sm:$0xff]
        %v321 = vmul.f32 %v320, 0.17677669
        %v322 = vld [vmem:[%s269] sm:$0xff]
        %vm323 = vcmask 261120
        %v325 = vsel %vm323, %v321, 0
        %v328 = vsel %vm323, %v322, 0
        %330 = vmatpush.xpose.msra.mxu0 0.0
        %331 = vmatpush.xpose.msra.mxu0 0.0
        %332 = vmatpush.xpose.msra.mxu0 0.0
        %333 = vmatpush.xpose.msra.mxu0 0.0
        %334 = vmatpush.xpose.msra.mxu0 0.0
        %335 = vmatpush.xpose.msra.mxu0 0.0
        %336 = vmatpush.xpose.msra.mxu0 0.0
        %337 = vmatpush.xpose.msra.mxu0 0.0
        %338 = vmatpush.xpose.msra.mxu0 0.0
        %339 = vmatpush.xpose.msra.mxu0 0.0
        %340 = vmatpush.xpose.msra.mxu0 0.0
        %341 = vmatpush.xpose.msra.mxu0 0.0
        %342 = vmatpush.xpose.msra.mxu0 0.0
        %343 = vmatpush.xpose.msra.mxu0 0.0
        %344 = vmatpush.xpose.msra.mxu0 0.0
        %345 = vmatpush.xpose.msra.mxu0 %v328
        %346 = vmatmul.f32.gmra.mxu0 %v325
        %v347 = vpop.f32.mrf.mxu0
        %v348 = vadd.f32 0.0, %v347
        %349 = vdwg.mxu0
        %vm350 = vcmask 64512
        %v351 = vsel %vm350, %v348, -inf
        %352 = vmax.xlane.f32.xlu0 %v351
        %v353 = vpop.xlane.xlu0 %352
        %v354 = vsub.f32 %v348, %v353
        %v355 = vmul.f32 %v354, 1.442695
        %v356 = vpow.pop %v355
        %v357 = vsel %vm350, %v356, 0.0
        %358 = vadd.xlane.f32.xlu0 %v357
        %v359 = vpop.xlane.xlu0 %358
        %v360 = vrcp.pop %v359
        %v361 = vmul.f32 %v359, %v360
        %v362 = vsub.f32 2.0, %v361
        %v363 = vmul.f32 %v360, %v362
        %v364 = vmul.f32 %v359, %v363
        %v365 = vsub.f32 2.0, %v364
        %v366 = vmul.f32 %v363, %v365
        %v367 = vmul.f32 %v356, %v366
        %v368 = vld [vmem:[%s279] sm:$0xff]
        %v370 = vsel %vm350, %v367, 0
        %372 = vmatpush.msra.mxu0 0.0
        %373 = vmatpush.msra.mxu0 0.0
        %374 = vmatpush.msra.mxu0 0.0
        %375 = vmatpush.msra.mxu0 0.0
        %376 = vmatpush.msra.mxu0 0.0
        %377 = vmatpush.msra.mxu0 0.0
        %378 = vmatpush.msra.mxu0 0.0
        %379 = vmatpush.msra.mxu0 0.0
        %380 = vmatpush.msra.mxu0 0.0
        %381 = vmatpush.msra.mxu0 0.0
        %382 = vmatpush.msra.mxu0 0.0
        %383 = vmatpush.msra.mxu0 0.0
        %384 = vmatpush.msra.mxu0 0.0
        %385 = vmatpush.msra.mxu0 0.0
        %386 = vmatpush.msra.mxu0 0.0
        %387 = vmatpush.msra.mxu0 %v368
        %388 = vmatmul.f32.gmra.mxu0 %v370
        %v389 = vpop.f32.mrf.mxu0
        %v390 = vadd.f32 0.0, %v389
        %391 = vdwg.mxu0
        %392 = vst.msk [vmem:[%s312] sm:$0xff] %vm323, %v390
        %393 = vst.msk [vmem:[%s319] sm:$0xff] %vm350, %v367
        %s394 = sand.u32 %s130, 1
        %s395 = scalar_lea.sflag [#allocation4], %s394
        %s396 = sand.u32 %s130, 1
        %s397 = smul.addr %s396, 8
        %s398 = scalar_lea.vmem [#allocation8], %s397
        %s399 = sand.u32 %s158, 1
        %s400 = scalar_lea.sflag [#allocation10], %s399
        %s401 = sand.u32 %s158, 1
        %s402 = smul.addr %s401, 8
        %s403 = scalar_lea.vmem [#allocation9], %s402
        // Predicated region
        $region45: #{tpu_custom_call.1} parent=31 // pred_check
          %p404 = pneg %p140
        $region46: #{tpu_custom_call.1} parent=31 // pred_check_branch
          %406 = sbr.rel (%p404) target = $region48
        $region47: #{tpu_custom_call.1} parent=31 // pred_region
          %408 = vsyncadd %s395, 0
          %s409 = sadd.s32 %s33, %s32
          %s410 = smul.addr %s409, 8
          %s411 = scalar_lea.hbm %s3, %s410
          %s413 = sshll.u32 %s398, 4
          %s414 = int_to_ptr.vmem [resolvable:$true] %s413
          %s415 = sshll.u32 %s411, 4
          %s416 = int_to_ptr.hbm [resolvable:$true] %s415
          %418 = dma.vmem_to_hbm [thread:$0]  %s414, 128, %s416, %s395
        $region48: #{tpu_custom_call.1} parent=31 // pred_fallthru
          _
        // Predicated region
        $region49: #{tpu_custom_call.1} parent=31 // pred_check
          %p419 = pneg %p168
        $region50: #{tpu_custom_call.1} parent=31 // pred_check_branch
          %421 = sbr.rel (%p419) target = $region52
        $region51: #{tpu_custom_call.1} parent=31 // pred_region
          %423 = vsyncadd %s400, 0
          %s424 = sadd.s32 %s33, %s32
          %s425 = smul.addr %s424, 8
          %s426 = scalar_lea.hbm %s4, %s425
          %s428 = sshll.u32 %s403, 4
          %s429 = int_to_ptr.vmem [resolvable:$true] %s428
          %s430 = sshll.u32 %s426, 4
          %s431 = int_to_ptr.hbm [resolvable:$true] %s430
          %433 = dma.vmem_to_hbm [thread:$0]  %s429, 128, %s431, %s400
        $region52: #{tpu_custom_call.1} parent=31 // pred_fallthru
          _
      $region32: #{tpu_custom_call.1} parent=5 // pred_fallthru
        _
      %p434 = scmp.le.s32.totalorder 2, %s23
      // Predicated region
      $region53: #{tpu_custom_call.1} parent=5 // pred_check
        %p435 = pneg %p434
      $region54: #{tpu_custom_call.1} parent=5 // pred_check_branch
        %437 = sbr.rel (%p435) target = $region56
      $region55: #{tpu_custom_call.1} parent=5 // pred_region
        %s438 = ssub.s32 %s23, 2
        // Predicated region
        $region57: #{tpu_custom_call.1} parent=55 // pred_check
          %p439 = pneg %p146
        $region58: #{tpu_custom_call.1} parent=55 // pred_check_branch
          %441 = sbr.rel (%p439) target = $region60
        $region59: #{tpu_custom_call.1} parent=55 // pred_region
          %s442 = sand.u32 %s131, 1
          %s443 = scalar_lea.sflag [#allocation4], %s442
          %s444 = sand.u32 %s131, 1
          %s445 = smul.addr %s444, 8
          %s446 = scalar_lea.vmem [#allocation8], %s445
          %448 = dma.done %s443, 128
        $region60: #{tpu_custom_call.1} parent=55 // pred_fallthru
          _
        // Predicated region
        $region61: #{tpu_custom_call.1} parent=55 // pred_check
          %p449 = pneg %p174
        $region62: #{tpu_custom_call.1} parent=55 // pred_check_branch
          %451 = sbr.rel (%p449) target = $region64
        $region63: #{tpu_custom_call.1} parent=55 // pred_region
          %s452 = sand.u32 %s159, 1
          %s453 = scalar_lea.sflag [#allocation10], %s452
          %s454 = sand.u32 %s159, 1
          %s455 = smul.addr %s454, 8
          %s456 = scalar_lea.vmem [#allocation9], %s455
          %458 = dma.done %s453, 128
        $region64: #{tpu_custom_call.1} parent=55 // pred_fallthru
          _
      $region56: #{tpu_custom_call.1} parent=5 // pred_fallthru
        _
    $region6: #{tpu_custom_call.1} parent=1 // loop_footer
      %s27 = sadd.s32 1, %s23
    $region7: #{tpu_custom_call.1} parent=1 // loop_footer_branch
      %22 = sbr.rel target = $region3
    $region8: #{tpu_custom_call.1} parent=1 // loop_exit
      _
    %459 = vsyncpa [#allocation3], 1
    %s460 = scalar_lea.sflag [#allocation3], 1
    %461 = vsyncpa %s460, 1
    %462 = vsyncpa [#allocation6], 1
    %s463 = scalar_lea.sflag [#allocation6], 1
    %464 = vsyncpa %s463, 1
    %465 = vsyncpa [#allocation4], 1
    %s466 = scalar_lea.sflag [#allocation4], 1
    %467 = vsyncpa %s466, 1
    %468 = vsyncpa [#allocation10], 1
    %s469 = scalar_lea.sflag [#allocation10], 1
    %470 = vsyncpa %s469, 1

</llo_original>
